<compile_context>
chip_gen: v7x
topology: tpu7x:2x2x1
jax: 0.10.0
libtpu: 0.0.40
codegen_flags: <defaults>
</compile_context>

<pallas_src>
import jax
import jax.numpy as jnp
from jax import lax
from jax.experimental import pallas as pl
from jax.experimental.pallas import tpu as pltpu


def _multiply_time_kernel(t2_ref, x_ref, o_ref):
    # t2_ref: (TB, 2)  -> column 0 = t[:, -2], column 1 = t[:, -1]
    # x_ref : (TB, D)
    diff = t2_ref[:, 1:2] - t2_ref[:, 0:1]          # (TB, 1), per-row scalar
    # Single full-width store: each output element written exactly once.
    o_ref[...] = x_ref[...] * diff.astype(x_ref.dtype)


def _choose_batch_tile(B, D, itemsize):
    """Pick a batch tile that fits comfortably in scoped VMEM (v7x-safe)."""
    budget = 16 * 1024 * 1024                       # headroom under 32 MiB scoped
    # double-buffered x tile + out tile + t2 tile
    per_row = 2 * (2 * D + 2) * itemsize
    cap = (budget // max(per_row, 1)) // 8 * 8
    cap = max(8, min(1024, cap))
    if B <= cap:
        return B                                    # full-extent block: always legal
    return cap                                      # multiple of 8; ragged edge masked


def multiply_time(x, t):
    """JAX/Pallas equivalent of MultiplyTime.forward(x, t)."""
    # Static shape branch, exactly as in the PyTorch module.
    if t.shape[1] == 1:
        return x

    B, D = x.shape
    itemsize = jnp.dtype(x.dtype).itemsize

    # Only the last two time columns are needed; slicing at the caller keeps
    # the kernel's DMA traffic minimal.
    t2 = lax.slice_in_dim(t, t.shape[1] - 2, t.shape[1], axis=1)  # (B, 2)
    t2 = t2.astype(x.dtype)

    TB = _choose_batch_tile(B, D, itemsize)
    grid = (pl.cdiv(B, TB),)

    cost = pl.CostEstimate(
        flops=int(B * D + B),                       # B*D multiplies + B subtractions
        transcendentals=0,
        bytes_accessed=int((2 * B * D + 2 * B) * itemsize),
    )

    return pl.pallas_call(
        _multiply_time_kernel,
        out_shape=jax.ShapeDtypeStruct((B, D), x.dtype),
        grid_spec=pltpu.PrefetchScalarGridSpec(
            num_scalar_prefetch=0,
            grid=grid,
            in_specs=[
                pl.BlockSpec((TB, 2), lambda i: (i, 0)),   # last two t columns
                pl.BlockSpec((TB, D), lambda i: (i, 0)),   # x tile (full feature dim)
            ],
            out_specs=pl.BlockSpec((TB, D), lambda i: (i, 0)),
        ),
        compiler_params=pltpu.CompilerParams(
            dimension_semantics=("parallel",),      # shard batch tiles across TCs (v7x)
            vmem_limit_bytes=64 * 1024 * 1024,
        ),
        cost_estimate=cost,
    )(t2, x)


if __name__ == "__main__":
    key = jax.random.PRNGKey(0)
    kx, kt = jax.random.split(key)

    B, D, T = 2, 16, 8
    x = jax.random.normal(kx, (B, D), dtype=jnp.float32)
    t = jax.random.normal(kt, (B, T), dtype=jnp.float32)

    out = multiply_time(x, t)
    out = jax.block_until_ready(out)

    # Reference (plain JAX), matching the PyTorch module.
    diff_t = (t[:, -1] - t[:, -2]).reshape(-1, 1)
    ref = x * diff_t
    assert out.shape == (B, D)
    assert jnp.allclose(out, ref, rtol=1e-6, atol=1e-6), "mismatch vs reference"

    # Branch where t has a single time column: identity.
    t1 = jax.random.normal(kt, (B, 1), dtype=jnp.float32)
    out1 = jax.block_until_ready(multiply_time(x, t1))
    assert jnp.allclose(out1, x), "identity branch mismatch"

    print("KERNEL_OK")
</pallas_src>

<mosaic_0001>
module attributes {stable_mosaic.version = 11 : i64} {
  func.func @_multiply_time_kernel(%arg0: i32, %arg1: memref<2x2xf32, #tpu.memory_space<vmem>>, %arg2: memref<2x16xf32, #tpu.memory_space<vmem>>, %arg3: memref<2x16xf32, #tpu.memory_space<vmem>>) attributes {dimension_semantics = [#tpu.dimension_semantics<parallel>], iteration_bounds = array<i64: 1>, scalar_prefetch = 0 : i64, scratch_operands = 0 : i64, tpu.core_type = #tpu.core_type<tc>, window_params = [{transform_indices = @transform_0, window_bounds = array<i64: 2, 2>}, {transform_indices = @transform_1, window_bounds = array<i64: 2, 16>}, {transform_indices = @transform_2, window_bounds = array<i64: 2, 16>}]} {
    %c0 = arith.constant 0 : index
    %c1 = arith.constant 1 : index
    %0 = vector.load %arg1[%c0, %c1] : memref<2x2xf32, #tpu.memory_space<vmem>>, vector<2x1xf32>
    %c0_0 = arith.constant 0 : index
    %c0_1 = arith.constant 0 : index
    %1 = vector.load %arg1[%c0_0, %c0_1] : memref<2x2xf32, #tpu.memory_space<vmem>>, vector<2x1xf32>
    %2 = arith.subf %0, %1 : vector<2x1xf32>
    %c0_2 = arith.constant 0 : index
    %c0_3 = arith.constant 0 : index
    %3 = vector.load %arg2[%c0_2, %c0_3] : memref<2x16xf32, #tpu.memory_space<vmem>>, vector<2x16xf32>
    %4 = vector.broadcast %2 : vector<2x1xf32> to vector<2x16xf32>
    %5 = arith.mulf %3, %4 : vector<2x16xf32>
    %c0_4 = arith.constant 0 : index
    %c0_5 = arith.constant 0 : index
    %6 = vector.load %arg3[%c0_4, %c0_5] : memref<2x16xf32, #tpu.memory_space<vmem>>, vector<2x16xf32>
    tpu.vector_store %arg3[%c0_4, %c0_5], %5 {strides = array<i32>} : memref<2x16xf32, #tpu.memory_space<vmem>>, vector<2x16xf32>,
    return
  }
  func.func @transform_0(%arg0: i32) -> (i32, i32) {
    %c0_i32 = arith.constant 0 : i32
    %c0_i32_0 = arith.constant 0 : i32
    return %arg0, %c0_i32 : i32, i32
  }
  func.func @transform_1(%arg0: i32) -> (i32, i32) {
    %c0_i32 = arith.constant 0 : i32
    %c0_i32_0 = arith.constant 0 : i32
    return %arg0, %c0_i32 : i32, i32
  }
  func.func @transform_2(%arg0: i32) -> (i32, i32) {
    %c0_i32 = arith.constant 0 : i32
    %c0_i32_0 = arith.constant 0 : i32
    return %arg0, %c0_i32 : i32, i32
  }
}

</mosaic_0001>

<llo_original>
// kernel: tpu_custom_call.1
$region0: #{tpu_custom_call.1}
  #allocation0 [shape = 'u32[]', space=smem, size = 0x4, offset = 0x4, fixed_abs, tag = 'smem constant byte address 0x4 - core index']
  #allocation1 [shape = 'u32[144,128]{1,0:T(1,128)}', space=vmem, size = 0x12000, scoped, tag = 'internal scratch']
  %s0 = inlined_call_operand.hbm [shape: f32[2,2], index: 0, kind: input, shape index: {}]
  %s1 = inlined_call_operand.hbm [shape: f32[2,16], index: 1, kind: input, shape index: {}]
  %s2 = inlined_call_operand.hbm [shape: f32[2,16], index: 2, kind: output, shape index: {}]
  %s3 = sld [smem:[#allocation0]]
  $region26: #{tpu_custom_call.1} parent=0
    _
  %s5 = ssub.s32 1, %s3
  %s6 = scalar_select 0, %s5, %s3
  $region1: #{tpu_custom_call.1} parent=0
    #allocation2 [shape = 'u8[1024]{0}', space=vmem, size = 0x400, scoped, tag = 'input window, operand 0, single buffered']
    #allocation3 [shape = 's32[1]{0}', space=sflag, size = 0x4, scoped, tag = 'scoped memory for tpu_custom_call.1']
    #allocation4 [shape = 's32[1]{0}', space=sflag, size = 0x4, scoped, tag = 'scoped memory for tpu_custom_call.1']
    #allocation5 [shape = 'u8[1024]{0}', space=vmem, size = 0x400, scoped, tag = 'input window, operand 1, single buffered']
    #allocation6 [shape = 's32[1]{0}', space=sflag, size = 0x4, scoped, tag = 'scoped memory for tpu_custom_call.1']
    #allocation7 [shape = 'u8[1024]{0}', space=vmem, size = 0x400, scoped, tag = 'output window, operand 0, single buffered']
    %7 = vsyncpa [#allocation3], 0
    %8 = vsyncpa [#allocation6], 0
    %9 = vsyncpa [#allocation4], 0
    // Predicated region
    $region2: #{tpu_custom_call.1} parent=1 // pred_check
      _
    $region3: #{tpu_custom_call.1} parent=1 // pred_check_branch
      %11 = sbr.rel (0) target = $region5
    $region4: #{tpu_custom_call.1} parent=1 // pred_region
      %s13 = ssub.s32 32, 32
      %14 = vsyncadd [#allocation3], %s13
      %s16 = sshll.u32 [#allocation2], 4
      %s17 = int_to_ptr.vmem [resolvable:$true] %s16
      %19 = dma.hbm_to_vmem [thread:$0]  %s0, 32, %s17, [#allocation3]
    $region5: #{tpu_custom_call.1} parent=1 // pred_fallthru
      _
    // Predicated region
    $region6: #{tpu_custom_call.1} parent=1 // pred_check
      _
    $region7: #{tpu_custom_call.1} parent=1 // pred_check_branch
      %21 = sbr.rel (0) target = $region9
    $region8: #{tpu_custom_call.1} parent=1 // pred_region
      %s23 = ssub.s32 32, 32
      %24 = vsyncadd [#allocation6], %s23
      %s26 = sshll.u32 [#allocation5], 4
      %s27 = int_to_ptr.vmem [resolvable:$true] %s26
      %29 = dma.hbm_to_vmem [thread:$0]  %s1, 32, %s27, [#allocation6]
    $region9: #{tpu_custom_call.1} parent=1 // pred_fallthru
      _
    // Predicated region
    $region10: #{tpu_custom_call.1} parent=1 // pred_check
      _
    $region11: #{tpu_custom_call.1} parent=1 // pred_check_branch
      %31 = sbr.rel (0) target = $region13
    $region12: #{tpu_custom_call.1} parent=1 // pred_region
      %32 = dma.done [#allocation3], 32
    $region13: #{tpu_custom_call.1} parent=1 // pred_fallthru
      _
    // Predicated region
    $region14: #{tpu_custom_call.1} parent=1 // pred_check
      _
    $region15: #{tpu_custom_call.1} parent=1 // pred_check_branch
      %34 = sbr.rel (0) target = $region17
    $region16: #{tpu_custom_call.1} parent=1 // pred_region
      %35 = dma.done [#allocation6], 32
    $region17: #{tpu_custom_call.1} parent=1 // pred_fallthru
      _
    %v36 = vld [vmem:[#allocation2] sm:$0x3]
    %38 = vrot.lane.b32.xlu0 %v36, 1
    %v39 = vpop.permute.xlu0 %38
    %v41 = vsub.f32 %v36, %v39
    %v42 = vld [vmem:[#allocation5] sm:$0x3]
    %44 = vset.pattern.permute.xlu0 1
    %45 = vperm.xlu0 %44, %v41
    %v46 = vpop.permute.xlu0 %45
    %v48 = vmul.f32 %v42, %v46
    %vm49 = vcmask 123904
    %50 = vst.msk [vmem:[#allocation7] sm:$0x3] %vm49, %v48
    // Predicated region
    $region18: #{tpu_custom_call.1} parent=1 // pred_check
      _
    $region19: #{tpu_custom_call.1} parent=1 // pred_check_branch
      %52 = sbr.rel (0) target = $region21
    $region20: #{tpu_custom_call.1} parent=1 // pred_region
      %s54 = ssub.s32 32, 32
      %55 = vsyncadd [#allocation4], %s54
      %s57 = sshll.u32 [#allocation7], 4
      %s58 = int_to_ptr.vmem [resolvable:$true] %s57
      %60 = dma.vmem_to_hbm [thread:$0]  %s58, 32, %s2, [#allocation4]
    $region21: #{tpu_custom_call.1} parent=1 // pred_fallthru
      _
    // Predicated region
    $region22: #{tpu_custom_call.1} parent=1 // pred_check
      _
    $region23: #{tpu_custom_call.1} parent=1 // pred_check_branch
      %62 = sbr.rel (0) target = $region25
    $region24: #{tpu_custom_call.1} parent=1 // pred_region
      %63 = dma.done [#allocation4], 32
    $region25: #{tpu_custom_call.1} parent=1 // pred_fallthru
      _
    %64 = vsyncpa [#allocation3], 1
    %65 = vsyncpa [#allocation6], 1
    %66 = vsyncpa [#allocation4], 1

</llo_original>
